<compile_context>
chip_gen: v7x
topology: tpu7x:2x2x1
jax: 0.10.0
libtpu: 0.0.40
codegen_flags: <defaults>
</compile_context>

<pallas_src>
import jax
import jax.numpy as jnp
from jax.experimental import pallas as pl
from jax.experimental.pallas import tpu as pltpu  # noqa: F401  (TPU-specific hooks if needed later)

DIM = 128
N_HEADS = 8
HEAD_DIM = DIM // N_HEADS
SCALE = HEAD_DIM ** (-0.5)        # 0.25 ; the module computes qk.div(scale)
INV_SCALE = 1.0 / SCALE           # qk.div(0.25) == qk * 4.0
DROPOUT_P = 0.01                  # F.dropout default (training=True) semantics
KEEP_SCALE = 1.0 / (1.0 - DROPOUT_P)


def attn_kernel(q_ref, k_ref, v_ref, mask_ref, o_ref):
    """Whole-problem attention in a single invocation (no grid).

    q/k/v : (B, S, D) f32 blocks resident in VMEM
    mask  : (B, S, S) f32 dropout mask, values already 0.0 or 1/(1-p)
    """
    q = q_ref[...]
    k = k_ref[...]
    v = v_ref[...]
    mask = mask_ref[...]

    # qk = query @ key^T, then divide by scale (== multiply by 4).  MXU, f32 acc.
    s = jnp.einsum("bqd,bkd->bqk", q, k,
                   preferred_element_type=jnp.float32) * jnp.float32(INV_SCALE)

    # softmax over last axis, fused with the dropout keep/rescale in one
    # elementwise pass:  probs = exp(s - max) * (1/sum) * mask
    m = jnp.max(s, axis=-1, keepdims=True)
    e = jnp.exp(s - m)
    inv_denom = 1.0 / jnp.sum(e, axis=-1, keepdims=True)
    probs = e * inv_denom * mask

    # output = dropout_qk @ value   (second MXU matmul)
    out = jnp.einsum("bqk,bkd->bqd", probs.astype(v.dtype), v,
                     preferred_element_type=jnp.float32)
    o_ref[...] = out.astype(o_ref.dtype)


def model_forward(query, key, value, dropout_key):
    B, S, D = query.shape

    # Dropout mask is drawn outside the kernel with jax.random (deterministic,
    # counter-based).  The stateful TPU PRNG (pltpu.prng_seed/prng_random_bits)
    # has no interpret/CPU lowering and is unnecessary here: (B,S,S)=512 floats
    # are free to generate on the host side, and the kernel just fuses the
    # masked rescale into the softmax normalization.
    keep = jax.random.bernoulli(dropout_key, 1.0 - DROPOUT_P, (B, S, S))
    mask = keep.astype(jnp.float32) * jnp.float32(KEEP_SCALE)

    # Tiny, latency-bound workload (each tensor ~16 KiB): collapse the former
    # per-batch grid into ONE un-gridded block covering all of (B, S, D).
    # Everything fits in VMEM with >300x headroom on v5e/v6e/v7x, so no tiling.
    return pl.pallas_call(
        attn_kernel,
        out_shape=jax.ShapeDtypeStruct((B, S, D), jnp.float32),
        in_specs=[
            pl.BlockSpec((B, S, D), lambda: (0, 0, 0)),  # query
            pl.BlockSpec((B, S, D), lambda: (0, 0, 0)),  # key
            pl.BlockSpec((B, S, D), lambda: (0, 0, 0)),  # value
            pl.BlockSpec((B, S, S), lambda: (0, 0, 0)),  # dropout keep mask
        ],
        out_specs=pl.BlockSpec((B, S, D), lambda: (0, 0, 0)),
    )(query, key, value, mask)


def init_params(rng):
    # fc_0 .. fc_3 are declared in the module's __init__ but NEVER used in
    # forward(); initialized deterministically for completeness only.
    k0, k1, k2, k3 = jax.random.split(rng, 4)
    return {
        "fc_0_w": jax.random.normal(k0, (DIM, DIM), jnp.float32) * 0.02,
        "fc_0_b": jnp.zeros((DIM,), jnp.float32),
        "fc_1_w": jax.random.normal(k1, (DIM, DIM), jnp.float32) * 0.02,
        "fc_2_w": jax.random.normal(k2, (DIM, DIM), jnp.float32) * 0.02,
        "fc_2_b": jnp.zeros((DIM,), jnp.float32),
        "fc_3_w": jax.random.normal(k3, (DIM, DIM), jnp.float32) * 0.02,
        "fc_3_b": jnp.zeros((DIM,), jnp.float32),  # frozen zeros in the module
    }


if __name__ == "__main__":
    root = jax.random.PRNGKey(0)
    kq, kk, kv, kp, kd = jax.random.split(root, 5)

    B, S, D = 2, 16, DIM   # matches the PyTorch test inputs (2, 16, 128)
    query = jax.random.normal(kq, (B, S, D), jnp.float32)
    key = jax.random.normal(kk, (B, S, D), jnp.float32)
    value = jax.random.normal(kv, (B, S, D), jnp.float32)

    _ = init_params(kp)    # unused in forward, mirrors the reference module

    out = model_forward(query, key, value, dropout_key=kd)
    out = jax.block_until_ready(out)

    assert out.shape == (B, S, D) and out.dtype == jnp.float32
    assert bool(jnp.isfinite(out).all())

    print("KERNEL_OK")
</pallas_src>

<mosaic_0001>
module attributes {stable_mosaic.version = 11 : i64} {
  func.func @attn_kernel(%arg0: memref<2x16x128xf32, #tpu.memory_space<vmem>>, %arg1: memref<2x16x128xf32, #tpu.memory_space<vmem>>, %arg2: memref<2x16x128xf32, #tpu.memory_space<vmem>>, %arg3: memref<2x16x16xf32, #tpu.memory_space<vmem>>, %arg4: memref<2x16x128xf32, #tpu.memory_space<vmem>>) attributes {dimension_semantics = [], scalar_prefetch = 0 : i64, scratch_operands = 0 : i64, tpu.core_type = #tpu.core_type<tc>} {
    %c0 = arith.constant 0 : index
    %c0_0 = arith.constant 0 : index
    %c0_1 = arith.constant 0 : index
    %0 = vector.load %arg0[%c0, %c0_0, %c0_1] : memref<2x16x128xf32, #tpu.memory_space<vmem>>, vector<2x16x128xf32>
    %c0_2 = arith.constant 0 : index
    %c0_3 = arith.constant 0 : index
    %c0_4 = arith.constant 0 : index
    %1 = vector.load %arg1[%c0_2, %c0_3, %c0_4] : memref<2x16x128xf32, #tpu.memory_space<vmem>>, vector<2x16x128xf32>
    %c0_5 = arith.constant 0 : index
    %c0_6 = arith.constant 0 : index
    %c0_7 = arith.constant 0 : index
    %2 = vector.load %arg2[%c0_5, %c0_6, %c0_7] : memref<2x16x128xf32, #tpu.memory_space<vmem>>, vector<2x16x128xf32>
    %c0_8 = arith.constant 0 : index
    %c0_9 = arith.constant 0 : index
    %c0_10 = arith.constant 0 : index
    %3 = vector.load %arg3[%c0_8, %c0_9, %c0_10] : memref<2x16x16xf32, #tpu.memory_space<vmem>>, vector<2x16x16xf32>
    "tpu.trace_start"() <{level = 10 : i32, message = "bqd,bkd->bqk"}> : () -> ()
    %cst = arith.constant dense<0.000000e+00> : vector<2x16x16xf32>
    %4 = tpu.matmul %0, %1, %cst {dimension_numbers = #tpu.dot_dimension_numbers<[2], [2], [1], [1], [0, 0, 0, 1, 1, 1], [0], [0]>} : vector<2x16x128xf32>, vector<2x16x128xf32>, vector<2x16x16xf32> -> vector<2x16x16xf32>
    "tpu.trace_stop"() : () -> ()
    %cst_11 = arith.constant 4.000000e+00 : f32
    %5 = vector.broadcast %cst_11 : f32 to vector<2x16x16xf32>
    %6 = arith.mulf %4, %5 : vector<2x16x16xf32>
    %cst_12 = arith.constant dense<0xFF800000> : vector<2x16xf32>
    %7 = vector.multi_reduction <maximumf>, %6, %cst_12 [2] : vector<2x16x16xf32> to vector<2x16xf32>
    %8 = vector.shape_cast %7 : vector<2x16xf32> to vector<2x16x1xf32>
    %9 = vector.broadcast %8 : vector<2x16x1xf32> to vector<2x16x16xf32>
    %10 = arith.subf %6, %9 : vector<2x16x16xf32>
    %11 = math.exp %10 : vector<2x16x16xf32>
    %cst_13 = arith.constant dense<0.000000e+00> : vector<2x16xf32>
    %12 = vector.multi_reduction <add>, %11, %cst_13 [2] : vector<2x16x16xf32> to vector<2x16xf32>
    %13 = vector.shape_cast %12 : vector<2x16xf32> to vector<2x16x1xf32>
    %cst_14 = arith.constant 1.000000e+00 : f32
    %14 = vector.broadcast %cst_14 : f32 to vector<2x16x1xf32>
    %15 = arith.divf %14, %13 : vector<2x16x1xf32>
    %16 = vector.broadcast %15 : vector<2x16x1xf32> to vector<2x16x16xf32>
    %17 = arith.mulf %11, %16 : vector<2x16x16xf32>
    %18 = arith.mulf %17, %3 : vector<2x16x16xf32>
    "tpu.trace_start"() <{level = 10 : i32, message = "bqk,bkd->bqd"}> : () -> ()
    %cst_15 = arith.constant dense<0.000000e+00> : vector<2x16x128xf32>
    %19 = tpu.matmul %18, %2, %cst_15 {dimension_numbers = #tpu.dot_dimension_numbers<[2], [1], [1], [2], [0, 0, 0, 1, 1, 2], [0], [0]>} : vector<2x16x16xf32>, vector<2x16x128xf32>, vector<2x16x128xf32> -> vector<2x16x128xf32>
    "tpu.trace_stop"() : () -> ()
    %c0_16 = arith.constant 0 : index
    %c0_17 = arith.constant 0 : index
    %c0_18 = arith.constant 0 : index
    %20 = vector.load %arg4[%c0_16, %c0_17, %c0_18] : memref<2x16x128xf32, #tpu.memory_space<vmem>>, vector<2x16x128xf32>
    tpu.vector_store %arg4[%c0_16, %c0_17, %c0_18], %19 {strides = array<i32>} : memref<2x16x128xf32, #tpu.memory_space<vmem>>, vector<2x16x128xf32>,
    return
  }
}

</mosaic_0001>

<llo_original>
// kernel: tpu_custom_call.1
$region0: #{tpu_custom_call.1}
  #allocation0 [shape = 'u32[]', space=smem, size = 0x4, offset = 0x4, fixed_abs, tag = 'smem constant byte address 0x4 - core index']
  #allocation1 [shape = 'u32[144,128]{1,0:T(1,128)}', space=vmem, size = 0x12000, scoped, tag = 'internal scratch']
  %s0 = inlined_call_operand.hbm [shape: f32[2,16,128], index: 0, kind: input, shape index: {}]
  %s1 = inlined_call_operand.hbm [shape: f32[2,16,128], index: 1, kind: input, shape index: {}]
  %s2 = inlined_call_operand.hbm [shape: f32[2,16,128], index: 2, kind: input, shape index: {}]
  %s3 = inlined_call_operand.hbm [shape: f32[2,16,16], index: 3, kind: input, shape index: {}]
  %s4 = inlined_call_operand.hbm [shape: f32[2,16,128], index: 4, kind: output, shape index: {}]
  %s5 = sld [smem:[#allocation0]]
  $region42: #{tpu_custom_call.1} parent=0
    _
  %s7 = ssub.s32 1, %s5
  %s8 = scalar_select 0, %s7, %s5
  $region1: #{tpu_custom_call.1} parent=0
    #allocation2 [shape = 'u8[16384]{0}', space=vmem, size = 0x4000, scoped, tag = 'input window, operand 0, single buffered']
    #allocation3 [shape = 's32[1]{0}', space=sflag, size = 0x4, scoped, tag = 'scoped memory for tpu_custom_call.1']
    #allocation4 [shape = 's32[1]{0}', space=sflag, size = 0x4, scoped, tag = 'scoped memory for tpu_custom_call.1']
    #allocation5 [shape = 'u8[16384]{0}', space=vmem, size = 0x4000, scoped, tag = 'input window, operand 1, single buffered']
    #allocation6 [shape = 's32[1]{0}', space=sflag, size = 0x4, scoped, tag = 'scoped memory for tpu_custom_call.1']
    #allocation7 [shape = 'u8[16384]{0}', space=vmem, size = 0x4000, scoped, tag = 'input window, operand 2, single buffered']
    #allocation8 [shape = 'u8[16384]{0}', space=vmem, size = 0x4000, scoped, tag = 'input window, operand 3, single buffered']
    #allocation9 [shape = 's32[1]{0}', space=sflag, size = 0x4, scoped, tag = 'scoped memory for tpu_custom_call.1']
    #allocation10 [shape = 'u8[16384]{0}', space=vmem, size = 0x4000, scoped, tag = 'output window, operand 0, single buffered']
    %9 = vsyncpa [#allocation3], 0
    %10 = vsyncpa [#allocation6], 0
    %11 = vsyncpa [#allocation9], 0
    %12 = vsyncpa [#allocation4], 0
    // Predicated region
    $region2: #{tpu_custom_call.1} parent=1 // pred_check
      _
    $region3: #{tpu_custom_call.1} parent=1 // pred_check_branch
      %14 = sbr.rel (0) target = $region5
    $region4: #{tpu_custom_call.1} parent=1 // pred_region
      %s16 = ssub.s32 512, 512
      %17 = vsyncadd [#allocation3], %s16
      %s18 = sshll.u32 [#allocation2], 4
      %s19 = int_to_ptr.vmem [resolvable:$true] %s18
      %24 = dma.hbm_to_vmem [thread:$0]  %s0, 512, %s19, [#allocation3], 128, 128, 8
    $region5: #{tpu_custom_call.1} parent=1 // pred_fallthru
      _
    // Predicated region
    $region6: #{tpu_custom_call.1} parent=1 // pred_check
      _
    $region7: #{tpu_custom_call.1} parent=1 // pred_check_branch
      %26 = sbr.rel (0) target = $region9
    $region8: #{tpu_custom_call.1} parent=1 // pred_region
      %s28 = ssub.s32 512, 512
      %29 = vsyncadd [#allocation6], %s28
      %s30 = sshll.u32 [#allocation5], 4
      %s31 = int_to_ptr.vmem [resolvable:$true] %s30
      %36 = dma.hbm_to_vmem [thread:$0]  %s1, 512, %s31, [#allocation6], 128, 128, 8
    $region9: #{tpu_custom_call.1} parent=1 // pred_fallthru
      _
    // Predicated region
    $region10: #{tpu_custom_call.1} parent=1 // pred_check
      _
    $region11: #{tpu_custom_call.1} parent=1 // pred_check_branch
      %38 = sbr.rel (0) target = $region13
    $region12: #{tpu_custom_call.1} parent=1 // pred_region
      %s40 = ssub.s32 512, 512
      %41 = vsyncadd [#allocation6], %s40
      %s42 = sshll.u32 [#allocation7], 4
      %s43 = int_to_ptr.vmem [resolvable:$true] %s42
      %48 = dma.hbm_to_vmem [thread:$0]  %s2, 512, %s43, [#allocation6], 128, 128, 8
    $region13: #{tpu_custom_call.1} parent=1 // pred_fallthru
      _
    // Predicated region
    $region14: #{tpu_custom_call.1} parent=1 // pred_check
      _
    $region15: #{tpu_custom_call.1} parent=1 // pred_check_branch
      %50 = sbr.rel (0) target = $region17
    $region16: #{tpu_custom_call.1} parent=1 // pred_region
      %s52 = ssub.s32 512, 512
      %53 = vsyncadd [#allocation9], %s52
      %s54 = sshll.u32 [#allocation8], 4
      %s55 = int_to_ptr.vmem [resolvable:$true] %s54
      %60 = dma.hbm_to_vmem [thread:$0]  %s3, 512, %s55, [#allocation9], 128, 128, 8
    $region17: #{tpu_custom_call.1} parent=1 // pred_fallthru
      _
    // Predicated region
    $region18: #{tpu_custom_call.1} parent=1 // pred_check
      _
    $region19: #{tpu_custom_call.1} parent=1 // pred_check_branch
      %62 = sbr.rel (0) target = $region21
    $region20: #{tpu_custom_call.1} parent=1 // pred_region
      %63 = dma.done [#allocation3], 512
    $region21: #{tpu_custom_call.1} parent=1 // pred_fallthru
      _
    // Predicated region
    $region22: #{tpu_custom_call.1} parent=1 // pred_check
      _
    $region23: #{tpu_custom_call.1} parent=1 // pred_check_branch
      %65 = sbr.rel (0) target = $region25
    $region24: #{tpu_custom_call.1} parent=1 // pred_region
      %66 = dma.done [#allocation6], 512
    $region25: #{tpu_custom_call.1} parent=1 // pred_fallthru
      _
    // Predicated region
    $region26: #{tpu_custom_call.1} parent=1 // pred_check
      _
    $region27: #{tpu_custom_call.1} parent=1 // pred_check_branch
      %68 = sbr.rel (0) target = $region29
    $region28: #{tpu_custom_call.1} parent=1 // pred_region
      %69 = dma.done [#allocation6], 512
    $region29: #{tpu_custom_call.1} parent=1 // pred_fallthru
      _
    // Predicated region
    $region30: #{tpu_custom_call.1} parent=1 // pred_check
      _
    $region31: #{tpu_custom_call.1} parent=1 // pred_check_branch
      %71 = sbr.rel (0) target = $region33
    $region32: #{tpu_custom_call.1} parent=1 // pred_region
      %72 = dma.done [#allocation9], 512
    $region33: #{tpu_custom_call.1} parent=1 // pred_fallthru
      _
    %v73 = vld [vmem:[#allocation2] sm:$0xff]
    %v74 = vld [vmem:[#allocation2 + $0x8] sm:$0xff]
    %v75 = vld [vmem:[#allocation2 + $0x10] sm:$0xff]
    %v76 = vld [vmem:[#allocation2 + $0x18] sm:$0xff]
    %v77 = vld [vmem:[#allocation5] sm:$0xff]
    %v78 = vld [vmem:[#allocation5 + $0x8] sm:$0xff]
    %v79 = vld [vmem:[#allocation5 + $0x10] sm:$0xff]
    %v80 = vld [vmem:[#allocation5 + $0x18] sm:$0xff]
    %v81 = vld [vmem:[#allocation7] sm:$0xff]
    %v82 = vld [vmem:[#allocation7 + $0x8] sm:$0xff]
    %v83 = vld [vmem:[#allocation7 + $0x10] sm:$0xff]
    %v84 = vld [vmem:[#allocation7 + $0x18] sm:$0xff]
    %v85 = vld [vmem:[#allocation8] sm:$0xff]
    %v86 = vld [vmem:[#allocation8 + $0x8] sm:$0xff]
    %v87 = vld [vmem:[#allocation8 + $0x10] sm:$0xff]
    %v88 = vld [vmem:[#allocation8 + $0x18] sm:$0xff]
    %89 = vmatprep.subr.mxu0 0.0
    %90 = vmatpush1.xpose.msra.mxu0 %v77
    %91 = vmatprep.subr.mxu0 0.0
    %92 = vmatpush1.xpose.msra.mxu0 %v78
    %93 = vmatprep.subr.mxu0 0.0
    %94 = vmatpush1.xpose.msra.mxu0 0.0
    %95 = vmatprep.subr.mxu0 0.0
    %96 = vmatpush1.xpose.msra.mxu0 0.0
    %97 = vmatprep.subr.mxu0 0.0
    %98 = vmatpush1.xpose.msra.mxu0 0.0
    %99 = vmatprep.subr.mxu0 0.0
    %100 = vmatpush1.xpose.msra.mxu0 0.0
    %101 = vmatprep.subr.mxu0 0.0
    %102 = vmatpush1.xpose.msra.mxu0 0.0
    %103 = vmatprep.subr.mxu0 0.0
    %104 = vmatpush1.xpose.msra.mxu0 0.0
    %105 = vmatprep.subr.mxu0 0.0
    %106 = vmatpush1.xpose.msra.mxu0 0.0
    %107 = vmatprep.subr.mxu0 0.0
    %108 = vmatpush1.xpose.msra.mxu0 0.0
    %109 = vmatprep.subr.mxu0 0.0
    %110 = vmatpush1.xpose.msra.mxu0 0.0
    %111 = vmatprep.subr.mxu0 0.0
    %112 = vmatpush1.xpose.msra.mxu0 0.0
    %113 = vmatprep.subr.mxu0 0.0
    %114 = vmatpush1.xpose.msra.mxu0 0.0
    %115 = vmatprep.subr.mxu0 0.0
    %116 = vmatpush1.xpose.msra.mxu0 0.0
    %117 = vmatprep.subr.mxu0 0.0
    %118 = vmatpush1.xpose.msra.mxu0 0.0
    %119 = vmatprep.subr.mxu0 0.0
    %120 = vmatpush1.xpose.msra.mxu0 0.0
    %121 = vmatprep.subr.mxu0 0.0
    %122 = vmatpush1.xpose.msra.mxu0 0.0
    %123 = vmatprep.subr.mxu0 0.0
    %124 = vmatpush1.xpose.msra.mxu0 0.0
    %125 = vmatprep.subr.mxu0 0.0
    %126 = vmatpush1.xpose.msra.mxu0 0.0
    %127 = vmatprep.subr.mxu0 0.0
    %128 = vmatpush1.xpose.msra.mxu0 0.0
    %129 = vmatprep.subr.mxu0 0.0
    %130 = vmatpush1.xpose.msra.mxu0 0.0
    %131 = vmatprep.subr.mxu0 0.0
    %132 = vmatpush1.xpose.msra.mxu0 0.0
    %133 = vmatprep.subr.mxu0 0.0
    %134 = vmatpush1.xpose.msra.mxu0 0.0
    %135 = vmatprep.subr.mxu0 0.0
    %136 = vmatpush1.xpose.msra.mxu0 0.0
    %137 = vmatprep.subr.mxu0 0.0
    %138 = vmatpush1.xpose.msra.mxu0 0.0
    %139 = vmatprep.subr.mxu0 0.0
    %140 = vmatpush1.xpose.msra.mxu0 0.0
    %141 = vmatprep.subr.mxu0 0.0
    %142 = vmatpush1.xpose.msra.mxu0 0.0
    %143 = vmatprep.subr.mxu0 0.0
    %144 = vmatpush1.xpose.msra.mxu0 0.0
    %145 = vmatprep.subr.mxu0 0.0
    %146 = vmatpush1.xpose.msra.mxu0 0.0
    %147 = vmatprep.subr.mxu0 0.0
    %148 = vmatpush1.xpose.msra.mxu0 0.0
    %149 = vmatprep.subr.mxu0 0.0
    %150 = vmatpush1.xpose.msra.mxu0 0.0
    %151 = vmatprep.subr.mxu0 0.0
    %152 = vmatpush1.xpose.msra.mxu0 0.0
    %153 = vmatprep.mubr.f32.mxu0 0.0
    %154 = vmatmul.mubr.f32.gmra.mrb[0].mxu0 %v73
    %v155 = vpop.f32.mrb[0].mxu0
    %v156 = vadd.f32 0.0, %v155
    %v157 = vpop.f32.mrb[0].mxu0
    %158 = vmatprep.mubr.f32.mxu0 0.0
    %159 = vmatmul.mubr.f32.gmra.mrb[0].mxu0 %v74
    %v160 = vpop.f32.mrb[0].mxu0
    %v161 = vadd.f32 0.0, %v160
    %v162 = vpop.f32.mrb[0].mxu0
    %163 = vdwg.mxu0
    %164 = vmatprep.subr.mxu0 0.0
    %165 = vmatpush1.xpose.msra.mxu0 %v79
    %166 = vmatprep.subr.mxu0 0.0
    %167 = vmatpush1.xpose.msra.mxu0 %v80
    %168 = vmatprep.subr.mxu0 0.0
    %169 = vmatpush1.xpose.msra.mxu0 0.0
    %170 = vmatprep.subr.mxu0 0.0
    %171 = vmatpush1.xpose.msra.mxu0 0.0
    %172 = vmatprep.subr.mxu0 0.0
    %173 = vmatpush1.xpose.msra.mxu0 0.0
    %174 = vmatprep.subr.mxu0 0.0
    %175 = vmatpush1.xpose.msra.mxu0 0.0
    %176 = vmatprep.subr.mxu0 0.0
    %177 = vmatpush1.xpose.msra.mxu0 0.0
    %178 = vmatprep.subr.mxu0 0.0
    %179 = vmatpush1.xpose.msra.mxu0 0.0
    %180 = vmatprep.subr.mxu0 0.0
    %181 = vmatpush1.xpose.msra.mxu0 0.0
    %182 = vmatprep.subr.mxu0 0.0
    %183 = vmatpush1.xpose.msra.mxu0 0.0
    %184 = vmatprep.subr.mxu0 0.0
    %185 = vmatpush1.xpose.msra.mxu0 0.0
    %186 = vmatprep.subr.mxu0 0.0
    %187 = vmatpush1.xpose.msra.mxu0 0.0
    %188 = vmatprep.subr.mxu0 0.0
    %189 = vmatpush1.xpose.msra.mxu0 0.0
    %190 = vmatprep.subr.mxu0 0.0
    %191 = vmatpush1.xpose.msra.mxu0 0.0
    %192 = vmatprep.subr.mxu0 0.0
    %193 = vmatpush1.xpose.msra.mxu0 0.0
    %194 = vmatprep.subr.mxu0 0.0
    %195 = vmatpush1.xpose.msra.mxu0 0.0
    %196 = vmatprep.subr.mxu0 0.0
    %197 = vmatpush1.xpose.msra.mxu0 0.0
    %198 = vmatprep.subr.mxu0 0.0
    %199 = vmatpush1.xpose.msra.mxu0 0.0
    %200 = vmatprep.subr.mxu0 0.0
    %201 = vmatpush1.xpose.msra.mxu0 0.0
    %202 = vmatprep.subr.mxu0 0.0
    %203 = vmatpush1.xpose.msra.mxu0 0.0
    %204 = vmatprep.subr.mxu0 0.0
    %205 = vmatpush1.xpose.msra.mxu0 0.0
    %206 = vmatprep.subr.mxu0 0.0
    %207 = vmatpush1.xpose.msra.mxu0 0.0
    %208 = vmatprep.subr.mxu0 0.0
    %209 = vmatpush1.xpose.msra.mxu0 0.0
    %210 = vmatprep.subr.mxu0 0.0
    %211 = vmatpush1.xpose.msra.mxu0 0.0
    %212 = vmatprep.subr.mxu0 0.0
    %213 = vmatpush1.xpose.msra.mxu0 0.0
    %214 = vmatprep.subr.mxu0 0.0
    %215 = vmatpush1.xpose.msra.mxu0 0.0
    %216 = vmatprep.subr.mxu0 0.0
    %217 = vmatpush1.xpose.msra.mxu0 0.0
    %218 = vmatprep.subr.mxu0 0.0
    %219 = vmatpush1.xpose.msra.mxu0 0.0
    %220 = vmatprep.subr.mxu0 0.0
    %221 = vmatpush1.xpose.msra.mxu0 0.0
    %222 = vmatprep.subr.mxu0 0.0
    %223 = vmatpush1.xpose.msra.mxu0 0.0
    %224 = vmatprep.subr.mxu0 0.0
    %225 = vmatpush1.xpose.msra.mxu0 0.0
    %226 = vmatprep.subr.mxu0 0.0
    %227 = vmatpush1.xpose.msra.mxu0 0.0
    %228 = vmatprep.mubr.f32.mxu0 0.0
    %229 = vmatmul.mubr.f32.gmra.mrb[0].mxu0 %v75
    %v230 = vpop.f32.mrb[0].mxu0
    %v231 = vadd.f32 0.0, %v230
    %v232 = vpop.f32.mrb[0].mxu0
    %233 = vmatprep.mubr.f32.mxu0 0.0
    %234 = vmatmul.mubr.f32.gmra.mrb[0].mxu0 %v76
    %v235 = vpop.f32.mrb[0].mxu0
    %v236 = vadd.f32 0.0, %v235
    %v237 = vpop.f32.mrb[0].mxu0
    %238 = vdwg.mxu0
    %v239 = vmul.f32 %v156, 4.0
    %v240 = vmul.f32 %v161, 4.0
    %v241 = vmul.f32 %v231, 4.0
    %v242 = vmul.f32 %v236, 4.0
    %vm243 = vcmask 130048
    %v244 = vsel %vm243, %v239, -inf
    %245 = vmax.xlane.f32.xlu0 %v244
    %v246 = vpop.xlane.xlu0 %245
    %v247 = vsel %vm243, %v240, -inf
    %248 = vmax.xlane.f32.xlu0 %v247
    %v249 = vpop.xlane.xlu0 %248
    %v250 = vsel %vm243, %v241, -inf
    %251 = vmax.xlane.f32.xlu0 %v250
    %v252 = vpop.xlane.xlu0 %251
    %v253 = vsel %vm243, %v242, -inf
    %254 = vmax.xlane.f32.xlu0 %v253
    %v255 = vpop.xlane.xlu0 %254
    %v256 = vsub.f32 %v239, %v246
    %v257 = vsub.f32 %v240, %v249
    %v258 = vsub.f32 %v241, %v252
    %v259 = vsub.f32 %v242, %v255
    %v260 = vmul.f32 %v256, 1.442695
    %v261 = vpow.pop %v260
    %v262 = vmul.f32 %v257, 1.442695
    %v263 = vpow.pop %v262
    %v264 = vmul.f32 %v258, 1.442695
    %v265 = vpow.pop %v264
    %v266 = vmul.f32 %v259, 1.442695
    %v267 = vpow.pop %v266
    %v268 = vsel %vm243, %v261, 0.0
    %269 = vadd.xlane.f32.xlu0 %v268
    %v270 = vpop.xlane.xlu0 %269
    %v271 = vsel %vm243, %v263, 0.0
    %272 = vadd.xlane.f32.xlu0 %v271
    %v273 = vpop.xlane.xlu0 %272
    %v274 = vsel %vm243, %v265, 0.0
    %275 = vadd.xlane.f32.xlu0 %v274
    %v276 = vpop.xlane.xlu0 %275
    %v277 = vsel %vm243, %v267, 0.0
    %278 = vadd.xlane.f32.xlu0 %v277
    %v279 = vpop.xlane.xlu0 %278
    %v280 = vrcp.pop %v270
    %v281 = vmul.f32 1.0, %v280
    %v282 = vrcp.pop %v273
    %v283 = vmul.f32 1.0, %v282
    %v284 = vrcp.pop %v276
    %v285 = vmul.f32 1.0, %v284
    %v286 = vrcp.pop %v279
    %v287 = vmul.f32 1.0, %v286
    %v288 = vmul.f32 %v261, %v281
    %v289 = vmul.f32 %v263, %v283
    %v290 = vmul.f32 %v265, %v285
    %v291 = vmul.f32 %v267, %v287
    %v292 = vmul.f32 %v288, %v85
    %v293 = vmul.f32 %v289, %v86
    %v294 = vmul.f32 %v290, %v87
    %v295 = vmul.f32 %v291, %v88
    %v297 = vsel %vm243, %v292, 0
    %v300 = vsel %vm243, %v293, 0
    %302 = vmatprep.subr.mxu0 0.0
    %303 = vmatpush1.msra.mxu0 %v81
    %304 = vmatprep.subr.mxu0 0.0
    %305 = vmatpush1.msra.mxu0 %v82
    %306 = vmatprep.subr.mxu0 0.0
    %307 = vmatpush1.msra.mxu0 0.0
    %308 = vmatprep.subr.mxu0 0.0
    %309 = vmatpush1.msra.mxu0 0.0
    %310 = vmatprep.subr.mxu0 0.0
    %311 = vmatpush1.msra.mxu0 0.0
    %312 = vmatprep.subr.mxu0 0.0
    %313 = vmatpush1.msra.mxu0 0.0
    %314 = vmatprep.subr.mxu0 0.0
    %315 = vmatpush1.msra.mxu0 0.0
    %316 = vmatprep.subr.mxu0 0.0
    %317 = vmatpush1.msra.mxu0 0.0
    %318 = vmatprep.subr.mxu0 0.0
    %319 = vmatpush1.msra.mxu0 0.0
    %320 = vmatprep.subr.mxu0 0.0
    %321 = vmatpush1.msra.mxu0 0.0
    %322 = vmatprep.subr.mxu0 0.0
    %323 = vmatpush1.msra.mxu0 0.0
    %324 = vmatprep.subr.mxu0 0.0
    %325 = vmatpush1.msra.mxu0 0.0
    %326 = vmatprep.subr.mxu0 0.0
    %327 = vmatpush1.msra.mxu0 0.0
    %328 = vmatprep.subr.mxu0 0.0
    %329 = vmatpush1.msra.mxu0 0.0
    %330 = vmatprep.subr.mxu0 0.0
    %331 = vmatpush1.msra.mxu0 0.0
    %332 = vmatprep.subr.mxu0 0.0
    %333 = vmatpush1.msra.mxu0 0.0
    %334 = vmatprep.subr.mxu0 0.0
    %335 = vmatpush1.msra.mxu0 0.0
    %336 = vmatprep.subr.mxu0 0.0
    %337 = vmatpush1.msra.mxu0 0.0
    %338 = vmatprep.subr.mxu0 0.0
    %339 = vmatpush1.msra.mxu0 0.0
    %340 = vmatprep.subr.mxu0 0.0
    %341 = vmatpush1.msra.mxu0 0.0
    %342 = vmatprep.subr.mxu0 0.0
    %343 = vmatpush1.msra.mxu0 0.0
    %344 = vmatprep.subr.mxu0 0.0
    %345 = vmatpush1.msra.mxu0 0.0
    %346 = vmatprep.subr.mxu0 0.0
    %347 = vmatpush1.msra.mxu0 0.0
    %348 = vmatprep.subr.mxu0 0.0
    %349 = vmatpush1.msra.mxu0 0.0
    %350 = vmatprep.subr.mxu0 0.0
    %351 = vmatpush1.msra.mxu0 0.0
    %352 = vmatprep.subr.mxu0 0.0
    %353 = vmatpush1.msra.mxu0 0.0
    %354 = vmatprep.subr.mxu0 0.0
    %355 = vmatpush1.msra.mxu0 0.0
    %356 = vmatprep.subr.mxu0 0.0
    %357 = vmatpush1.msra.mxu0 0.0
    %358 = vmatprep.subr.mxu0 0.0
    %359 = vmatpush1.msra.mxu0 0.0
    %360 = vmatprep.subr.mxu0 0.0
    %361 = vmatpush1.msra.mxu0 0.0
    %362 = vmatprep.subr.mxu0 0.0
    %363 = vmatpush1.msra.mxu0 0.0
    %364 = vmatprep.subr.mxu0 0.0
    %365 = vmatpush1.msra.mxu0 0.0
    %366 = vmatprep.mubr.f32.mxu0 0.0
    %367 = vmatmul.mubr.f32.gmra.mrb[0].mxu0 %v297
    %v368 = vpop.f32.mrb[0].mxu0
    %v369 = vadd.f32 0.0, %v368
    %v370 = vpop.f32.mrb[0].mxu0
    %371 = vmatprep.mubr.f32.mxu0 0.0
    %372 = vmatmul.mubr.f32.gmra.mrb[0].mxu0 %v300
    %v373 = vpop.f32.mrb[0].mxu0
    %v374 = vadd.f32 0.0, %v373
    %v375 = vpop.f32.mrb[0].mxu0
    %376 = vdwg.mxu0
    %v378 = vsel %vm243, %v294, 0
    %v381 = vsel %vm243, %v295, 0
    %383 = vmatprep.subr.mxu0 0.0
    %384 = vmatpush1.msra.mxu0 %v83
    %385 = vmatprep.subr.mxu0 0.0
    %386 = vmatpush1.msra.mxu0 %v84
    %387 = vmatprep.subr.mxu0 0.0
    %388 = vmatpush1.msra.mxu0 0.0
    %389 = vmatprep.subr.mxu0 0.0
    %390 = vmatpush1.msra.mxu0 0.0
    %391 = vmatprep.subr.mxu0 0.0
    %392 = vmatpush1.msra.mxu0 0.0
    %393 = vmatprep.subr.mxu0 0.0
    %394 = vmatpush1.msra.mxu0 0.0
    %395 = vmatprep.subr.mxu0 0.0
    %396 = vmatpush1.msra.mxu0 0.0
    %397 = vmatprep.subr.mxu0 0.0
    %398 = vmatpush1.msra.mxu0 0.0
    %399 = vmatprep.subr.mxu0 0.0
    %400 = vmatpush1.msra.mxu0 0.0
    %401 = vmatprep.subr.mxu0 0.0
    %402 = vmatpush1.msra.mxu0 0.0
    %403 = vmatprep.subr.mxu0 0.0
    %404 = vmatpush1.msra.mxu0 0.0
    %405 = vmatprep.subr.mxu0 0.0
    %406 = vmatpush1.msra.mxu0 0.0
    %407 = vmatprep.subr.mxu0 0.0
    %408 = vmatpush1.msra.mxu0 0.0
    %409 = vmatprep.subr.mxu0 0.0
    %410 = vmatpush1.msra.mxu0 0.0
    %411 = vmatprep.subr.mxu0 0.0
    %412 = vmatpush1.msra.mxu0 0.0
    %413 = vmatprep.subr.mxu0 0.0
    %414 = vmatpush1.msra.mxu0 0.0
    %415 = vmatprep.subr.mxu0 0.0
    %416 = vmatpush1.msra.mxu0 0.0
    %417 = vmatprep.subr.mxu0 0.0
    %418 = vmatpush1.msra.mxu0 0.0
    %419 = vmatprep.subr.mxu0 0.0
    %420 = vmatpush1.msra.mxu0 0.0
    %421 = vmatprep.subr.mxu0 0.0
    %422 = vmatpush1.msra.mxu0 0.0
    %423 = vmatprep.subr.mxu0 0.0
    %424 = vmatpush1.msra.mxu0 0.0
    %425 = vmatprep.subr.mxu0 0.0
    %426 = vmatpush1.msra.mxu0 0.0
    %427 = vmatprep.subr.mxu0 0.0
    %428 = vmatpush1.msra.mxu0 0.0
    %429 = vmatprep.subr.mxu0 0.0
    %430 = vmatpush1.msra.mxu0 0.0
    %431 = vmatprep.subr.mxu0 0.0
    %432 = vmatpush1.msra.mxu0 0.0
    %433 = vmatprep.subr.mxu0 0.0
    %434 = vmatpush1.msra.mxu0 0.0
    %435 = vmatprep.subr.mxu0 0.0
    %436 = vmatpush1.msra.mxu0 0.0
    %437 = vmatprep.subr.mxu0 0.0
    %438 = vmatpush1.msra.mxu0 0.0
    %439 = vmatprep.subr.mxu0 0.0
    %440 = vmatpush1.msra.mxu0 0.0
    %441 = vmatprep.subr.mxu0 0.0
    %442 = vmatpush1.msra.mxu0 0.0
    %443 = vmatprep.subr.mxu0 0.0
    %444 = vmatpush1.msra.mxu0 0.0
    %445 = vmatprep.subr.mxu0 0.0
    %446 = vmatpush1.msra.mxu0 0.0
    %447 = vmatprep.mubr.f32.mxu0 0.0
    %448 = vmatmul.mubr.f32.gmra.mrb[0].mxu0 %v378
    %v449 = vpop.f32.mrb[0].mxu0
    %v450 = vadd.f32 0.0, %v449
    %v451 = vpop.f32.mrb[0].mxu0
    %452 = vmatprep.mubr.f32.mxu0 0.0
    %453 = vmatmul.mubr.f32.gmra.mrb[0].mxu0 %v381
    %v454 = vpop.f32.mrb[0].mxu0
    %v455 = vadd.f32 0.0, %v454
    %v456 = vpop.f32.mrb[0].mxu0
    %457 = vdwg.mxu0
    %458 = vst [vmem:[#allocation10] sm:$0xff] %v369
    %459 = vst [vmem:[#allocation10 + $0x8] sm:$0xff] %v374
    %460 = vst [vmem:[#allocation10 + $0x10] sm:$0xff] %v450
    %461 = vst [vmem:[#allocation10 + $0x18] sm:$0xff] %v455
    // Predicated region
    $region34: #{tpu_custom_call.1} parent=1 // pred_check
      _
    $region35: #{tpu_custom_call.1} parent=1 // pred_check_branch
      %463 = sbr.rel (0) target = $region37
    $region36: #{tpu_custom_call.1} parent=1 // pred_region
      %s465 = ssub.s32 512, 512
      %466 = vsyncadd [#allocation4], %s465
      %s467 = sshll.u32 [#allocation10], 4
      %s468 = int_to_ptr.vmem [resolvable:$true] %s467
      %473 = dma.vmem_to_hbm [thread:$0]  %s468, 512, %s4, [#allocation4], 128, 128, 8
    $region37: #{tpu_custom_call.1} parent=1 // pred_fallthru
      _
    // Predicated region
    $region38: #{tpu_custom_call.1} parent=1 // pred_check
      _
    $region39: #{tpu_custom_call.1} parent=1 // pred_check_branch
      %475 = sbr.rel (0) target = $region41
    $region40: #{tpu_custom_call.1} parent=1 // pred_region
      %476 = dma.done [#allocation4], 512
    $region41: #{tpu_custom_call.1} parent=1 // pred_fallthru
      _
    %477 = vsyncpa [#allocation3], 1
    %478 = vsyncpa [#allocation6], 1
    %479 = vsyncpa [#allocation9], 1
    %480 = vsyncpa [#allocation4], 1

</llo_original>
